<compile_context>
chip_gen: v7x
topology: tpu7x:2x2x1
jax: 0.10.0
libtpu: 0.0.40
codegen_flags: <defaults>
</compile_context>

<pallas_src>
import jax
import jax.numpy as jnp
from jax.experimental import pallas as pl
from jax.experimental.pallas import tpu as pltpu

INPUT_SIZE = 5      # catagory == 'K3'
HIDDEN = 64
OUT = 1

H_PAD = 128         # hidden width padded to one full 128-lane vreg


def _round_up(x, m):
    return (x + m - 1) // m * m


def _mlp_kernel(x_ref, w1_ref, b1_ref, w2_ref, b2_ref, w3t_ref, b3_ref, o_ref):
    # One batch tile per grid step; weights/biases are VMEM-resident across
    # steps.  Matmuls on the MXU with f32 accumulation; bias-add + ReLU in f32
    # on the VPU.  Layer 3 (width 1) is a VPU multiply + XLU lane-reduction.
    cd = w1_ref.dtype
    x = x_ref[...].astype(cd)                                    # (tb, 5)
    h1 = jnp.dot(x, w1_ref[...], preferred_element_type=jnp.float32)
    h1 = jnp.maximum(h1 + b1_ref[...], 0.0)                      # f32 (tb, 128)
    h2 = jnp.dot(h1.astype(cd), w2_ref[...],
                 preferred_element_type=jnp.float32)
    h2 = jnp.maximum(h2 + b2_ref[...], 0.0)                      # f32 (tb, 128)
    o = jnp.sum(h2 * w3t_ref[...], axis=-1, keepdims=True) + b3_ref[...]
    o_ref[...] = o.astype(o_ref.dtype)                           # (tb, 1)


def fnn_model_1_forward(x, params, *, batch_tile=1024,
                        compute_dtype=jnp.bfloat16):
    """x: [B, INPUT_SIZE] float32 -> [B, 1] float32.

    params are unpadded: w: [in, out] (transposed vs nn.Linear), b: [1, out].
    compute_dtype controls the matmul operand dtype (bf16 default, f32 MXU
    accumulate); pass jnp.float32 for a bit-faithful f32 path.
    """
    w1, b1, w2, b2, w3, b3 = params
    B = x.shape[0]

    # ---- weight/bias padding (tiny, one-time, VMEM-resident) -------------
    w1_p = jnp.pad(w1, ((0, 0), (0, H_PAD - HIDDEN))).astype(compute_dtype)
    b1_p = jnp.pad(b1, ((0, 0), (0, H_PAD - HIDDEN)))             # f32
    w2_p = jnp.pad(w2, ((0, H_PAD - HIDDEN), (0, H_PAD - HIDDEN))
                   ).astype(compute_dtype)
    b2_p = jnp.pad(b2, ((0, 0), (0, H_PAD - HIDDEN)))             # f32
    w3t_p = jnp.pad(w3.T, ((0, 0), (0, H_PAD - HIDDEN)))          # (1, 128) f32
    # b3 stays (1, 1) f32

    # ---- batch tiling -----------------------------------------------------
    tb = min(batch_tile, _round_up(B, 8))
    # Keep >= 2 grid steps for non-trivial batches so both v7x TensorCores
    # get work (no-op for v5e/v6e single-TC and for tiny batches).
    if B > 8 and _round_up(B, tb) // tb < 2:
        tb = _round_up((B + 1) // 2, 8)
    b_pad = _round_up(B, tb)
    x_in = x if b_pad == B else jnp.pad(x, ((0, b_pad - B), (0, 0)))

    grid = (b_pad // tb,)
    resident = lambda shape: pl.BlockSpec(shape, lambda i: (0, 0))

    out = pl.pallas_call(
        _mlp_kernel,
        out_shape=jax.ShapeDtypeStruct((b_pad, OUT), jnp.float32),
        grid=grid,
        in_specs=[
            pl.BlockSpec((tb, INPUT_SIZE), lambda i: (i, 0)),  # x: batch-tiled
            resident((INPUT_SIZE, H_PAD)),                     # w1 (resident)
            resident((1, H_PAD)),                              # b1
            resident((H_PAD, H_PAD)),                          # w2
            resident((1, H_PAD)),                              # b2
            resident((1, H_PAD)),                              # w3^T
            resident((1, OUT)),                                # b3
        ],
        out_specs=pl.BlockSpec((tb, OUT), lambda i: (i, 0)),
        compiler_params=pltpu.CompilerParams(
            dimension_semantics=("parallel",)),
    )(x_in, w1_p, b1_p, w2_p, b2_p, w3t_p, b3)

    # Drop batch padding only; output width is already 1.
    return out[:B]


def init_params(key):
    """Deterministic init mimicking nn.Linear default (U[-1/sqrt(fan_in), +])."""
    ks = jax.random.split(key, 6)

    def linear(kw, kb, fan_in, fan_out):
        bound = 1.0 / jnp.sqrt(jnp.float32(fan_in))
        w = jax.random.uniform(kw, (fan_in, fan_out), jnp.float32, -bound, bound)
        b = jax.random.uniform(kb, (1, fan_out), jnp.float32, -bound, bound)
        return w, b

    w1, b1 = linear(ks[0], ks[1], INPUT_SIZE, HIDDEN)
    w2, b2 = linear(ks[2], ks[3], HIDDEN, HIDDEN)
    w3, b3 = linear(ks[4], ks[5], HIDDEN, OUT)
    return (w1, b1, w2, b2, w3, b3)


def _reference(x, params):
    w1, b1, w2, b2, w3, b3 = params
    h1 = jnp.maximum(x @ w1 + b1, 0.0)
    h2 = jnp.maximum(h1 @ w2 + b2, 0.0)
    return h2 @ w3 + b3


if __name__ == "__main__":
    key = jax.random.PRNGKey(0)
    k_x, k_p, k_x2 = jax.random.split(key, 3)
    params = init_params(k_p)

    # Small batch consistent with the module spec (K3 -> 5 input features).
    x_small = jax.random.normal(k_x, (8, INPUT_SIZE), jnp.float32)
    ref_small = _reference(x_small, params)

    # f32 compute path: tight tolerance.
    out_f32 = jax.block_until_ready(
        fnn_model_1_forward(x_small, params, compute_dtype=jnp.float32))
    assert out_f32.shape == (8, OUT)
    assert jnp.allclose(out_f32, ref_small, atol=1e-5, rtol=1e-5)

    # Default bf16 operand path (f32 accumulate): loose tolerance.
    out_bf16 = jax.block_until_ready(fnn_model_1_forward(x_small, params))
    assert out_bf16.shape == (8, OUT)
    assert jnp.allclose(out_bf16, ref_small, atol=5e-2, rtol=5e-2)

    # Larger batch exercises the multi-step batch grid (>=2 steps for v7x).
    x_big = jax.random.normal(k_x2, (512, INPUT_SIZE), jnp.float32)
    ref_big = _reference(x_big, params)
    out_big_f32 = jax.block_until_ready(
        fnn_model_1_forward(x_big, params, compute_dtype=jnp.float32))
    assert out_big_f32.shape == (512, OUT)
    assert jnp.allclose(out_big_f32, ref_big, atol=1e-5, rtol=1e-5)

    out_big_bf16 = jax.block_until_ready(fnn_model_1_forward(x_big, params))
    assert out_big_bf16.shape == (512, OUT)
    assert jnp.allclose(out_big_bf16, ref_big, atol=5e-2, rtol=5e-2)

    print("KERNEL_OK")
</pallas_src>

<mosaic_0001>
module attributes {stable_mosaic.version = 11 : i64} {
  func.func @_mlp_kernel(%arg0: i32, %arg1: memref<8x5xf32, #tpu.memory_space<vmem>>, %arg2: memref<5x128xf32, #tpu.memory_space<vmem>>, %arg3: memref<1x128xf32, #tpu.memory_space<vmem>>, %arg4: memref<128x128xf32, #tpu.memory_space<vmem>>, %arg5: memref<1x128xf32, #tpu.memory_space<vmem>>, %arg6: memref<1x128xf32, #tpu.memory_space<vmem>>, %arg7: memref<1x1xf32, #tpu.memory_space<vmem>>, %arg8: memref<8x1xf32, #tpu.memory_space<vmem>>) attributes {dimension_semantics = [#tpu.dimension_semantics<parallel>], iteration_bounds = array<i64: 1>, scalar_prefetch = 0 : i64, scratch_operands = 0 : i64, tpu.core_type = #tpu.core_type<tc>, window_params = [{transform_indices = @transform_0, window_bounds = array<i64: 8, 5>}, {pipeline_mode = #tpu.pipeline_mode<synchronous>, transform_indices = @transform_1, window_bounds = array<i64: 5, 128>}, {pipeline_mode = #tpu.pipeline_mode<synchronous>, transform_indices = @transform_2, window_bounds = array<i64: 1, 128>}, {pipeline_mode = #tpu.pipeline_mode<synchronous>, transform_indices = @transform_3, window_bounds = array<i64: 128, 128>}, {pipeline_mode = #tpu.pipeline_mode<synchronous>, transform_indices = @transform_4, window_bounds = array<i64: 1, 128>}, {pipeline_mode = #tpu.pipeline_mode<synchronous>, transform_indices = @transform_5, window_bounds = array<i64: 1, 128>}, {pipeline_mode = #tpu.pipeline_mode<synchronous>, transform_indices = @transform_6, window_bounds = array<i64: 1, 1>}, {transform_indices = @transform_7, window_bounds = array<i64: 8, 1>}]} {
    %c0 = arith.constant 0 : index
    %c0_0 = arith.constant 0 : index
    %0 = vector.load %arg1[%c0, %c0_0] : memref<8x5xf32, #tpu.memory_space<vmem>>, vector<8x5xf32>
    %c0_1 = arith.constant 0 : index
    %c0_2 = arith.constant 0 : index
    %1 = vector.load %arg2[%c0_1, %c0_2] : memref<5x128xf32, #tpu.memory_space<vmem>>, vector<5x128xf32>
    %cst = arith.constant dense<0.000000e+00> : vector<8x128xf32>
    %2 = tpu.matmul %0, %1, %cst {dimension_numbers = #tpu.dot_dimension_numbers<[1], [0], [0], [1], [0, 0, 1, 1], [], []>} : vector<8x5xf32>, vector<5x128xf32>, vector<8x128xf32> -> vector<8x128xf32>
    %c0_3 = arith.constant 0 : index
    %c0_4 = arith.constant 0 : index
    %3 = vector.load %arg3[%c0_3, %c0_4] : memref<1x128xf32, #tpu.memory_space<vmem>>, vector<1x128xf32>
    %4 = vector.broadcast %3 : vector<1x128xf32> to vector<8x128xf32>
    %5 = arith.addf %2, %4 : vector<8x128xf32>
    %cst_5 = arith.constant 0.000000e+00 : f32
    %6 = vector.broadcast %cst_5 : f32 to vector<8x128xf32>
    %7 = arith.maximumf %5, %6 : vector<8x128xf32>
    %c0_6 = arith.constant 0 : index
    %c0_7 = arith.constant 0 : index
    %8 = vector.load %arg4[%c0_6, %c0_7] : memref<128x128xf32, #tpu.memory_space<vmem>>, vector<128x128xf32>
    %cst_8 = arith.constant dense<0.000000e+00> : vector<8x128xf32>
    %9 = tpu.matmul %7, %8, %cst_8 {dimension_numbers = #tpu.dot_dimension_numbers<[1], [0], [0], [1], [0, 0, 1, 1], [], []>} : vector<8x128xf32>, vector<128x128xf32>, vector<8x128xf32> -> vector<8x128xf32>
    %c0_9 = arith.constant 0 : index
    %c0_10 = arith.constant 0 : index
    %10 = vector.load %arg5[%c0_9, %c0_10] : memref<1x128xf32, #tpu.memory_space<vmem>>, vector<1x128xf32>
    %11 = vector.broadcast %10 : vector<1x128xf32> to vector<8x128xf32>
    %12 = arith.addf %9, %11 : vector<8x128xf32>
    %cst_11 = arith.constant 0.000000e+00 : f32
    %13 = vector.broadcast %cst_11 : f32 to vector<8x128xf32>
    %14 = arith.maximumf %12, %13 : vector<8x128xf32>
    %c0_12 = arith.constant 0 : index
    %c0_13 = arith.constant 0 : index
    %15 = vector.load %arg6[%c0_12, %c0_13] : memref<1x128xf32, #tpu.memory_space<vmem>>, vector<1x128xf32>
    %16 = vector.broadcast %15 : vector<1x128xf32> to vector<8x128xf32>
    %17 = arith.mulf %14, %16 : vector<8x128xf32>
    %cst_14 = arith.constant dense<0.000000e+00> : vector<8xf32>
    %18 = vector.multi_reduction <add>, %17, %cst_14 [1] : vector<8x128xf32> to vector<8xf32>
    %19 = vector.shape_cast %18 : vector<8xf32> to vector<8x1xf32>
    %c0_15 = arith.constant 0 : index
    %c0_16 = arith.constant 0 : index
    %20 = vector.load %arg7[%c0_15, %c0_16] : memref<1x1xf32, #tpu.memory_space<vmem>>, vector<1x1xf32>
    %21 = vector.broadcast %20 : vector<1x1xf32> to vector<8x1xf32>
    %22 = arith.addf %19, %21 : vector<8x1xf32>
    %c0_17 = arith.constant 0 : index
    %c0_18 = arith.constant 0 : index
    %23 = vector.load %arg8[%c0_17, %c0_18] : memref<8x1xf32, #tpu.memory_space<vmem>>, vector<8x1xf32>
    tpu.vector_store %arg8[%c0_17, %c0_18], %22 {strides = array<i32>} : memref<8x1xf32, #tpu.memory_space<vmem>>, vector<8x1xf32>,
    return
  }
  func.func @transform_0(%arg0: i32) -> (i32, i32) {
    %c0_i32 = arith.constant 0 : i32
    %c0_i32_0 = arith.constant 0 : i32
    return %arg0, %c0_i32 : i32, i32
  }
  func.func @transform_1(%arg0: i32) -> (i32, i32) {
    %c0_i32 = arith.constant 0 : i32
    %c0_i32_0 = arith.constant 0 : i32
    %c0_i32_1 = arith.constant 0 : i32
    return %c0_i32, %c0_i32_0 : i32, i32
  }
  func.func @transform_2(%arg0: i32) -> (i32, i32) {
    %c0_i32 = arith.constant 0 : i32
    %c0_i32_0 = arith.constant 0 : i32
    %c0_i32_1 = arith.constant 0 : i32
    return %c0_i32, %c0_i32_0 : i32, i32
  }
  func.func @transform_3(%arg0: i32) -> (i32, i32) {
    %c0_i32 = arith.constant 0 : i32
    %c0_i32_0 = arith.constant 0 : i32
    %c0_i32_1 = arith.constant 0 : i32
    return %c0_i32, %c0_i32_0 : i32, i32
  }
  func.func @transform_4(%arg0: i32) -> (i32, i32) {
    %c0_i32 = arith.constant 0 : i32
    %c0_i32_0 = arith.constant 0 : i32
    %c0_i32_1 = arith.constant 0 : i32
    return %c0_i32, %c0_i32_0 : i32, i32
  }
  func.func @transform_5(%arg0: i32) -> (i32, i32) {
    %c0_i32 = arith.constant 0 : i32
    %c0_i32_0 = arith.constant 0 : i32
    %c0_i32_1 = arith.constant 0 : i32
    return %c0_i32, %c0_i32_0 : i32, i32
  }
  func.func @transform_6(%arg0: i32) -> (i32, i32) {
    %c0_i32 = arith.constant 0 : i32
    %c0_i32_0 = arith.constant 0 : i32
    %c0_i32_1 = arith.constant 0 : i32
    return %c0_i32, %c0_i32_0 : i32, i32
  }
  func.func @transform_7(%arg0: i32) -> (i32, i32) {
    %c0_i32 = arith.constant 0 : i32
    %c0_i32_0 = arith.constant 0 : i32
    return %arg0, %c0_i32 : i32, i32
  }
}

</mosaic_0001>

<llo_original>
// kernel: tpu_custom_call.1
$region0: #{tpu_custom_call.1}
  #allocation0 [shape = 'u32[]', space=smem, size = 0x4, offset = 0x4, fixed_abs, tag = 'smem constant byte address 0x4 - core index']
  #allocation1 [shape = 'u32[144,128]{1,0:T(1,128)}', space=vmem, size = 0x12000, scoped, tag = 'internal scratch']
  #allocation2 [shape = 'f32[1,1]{1,0:T(1,128)S(1)}', space=vmem, size = 0x200, scoped, tag = 'scoped memory for tpu_custom_call.1']
  %s0 = inlined_call_operand.hbm [shape: f32[8,5], index: 0, kind: input, shape index: {}]
  %s1 = inlined_call_operand.hbm [shape: f32[5,128], index: 1, kind: input, shape index: {}]
  %s2 = inlined_call_operand.vmem [shape: f32[1,128], index: 2, kind: input, shape index: {}]
  %s3 = inlined_call_operand.hbm [shape: f32[128,128], index: 3, kind: input, shape index: {}]
  %s4 = inlined_call_operand.vmem [shape: f32[1,128], index: 4, kind: input, shape index: {}]
  %s5 = inlined_call_operand.vmem [shape: f32[1,128], index: 5, kind: input, shape index: {}]
  %s6 = inlined_call_operand.<no memory space> [shape: f32[1,1], index: 6, kind: input, shape index: {}]
  %s7 = inlined_call_operand.vmem [shape: f32[8,1], index: 7, kind: output, shape index: {}]
  %s8 = sld [smem:[#allocation0]]
  $region50: #{tpu_custom_call.1} parent=0
    _
  %s10 = ssub.s32 1, %s8
  %s11 = scalar_select 0, %s10, %s8
  %v12 = vstv %s6
  %13 = vst [vmem:[#allocation2] sm:$0x1] %v12
  $region1: #{tpu_custom_call.1} parent=0
    #allocation3 [shape = 'u8[4096]{0}', space=vmem, size = 0x1000, scoped, tag = 'input window, operand 0, single buffered']
    #allocation4 [shape = 's32[1]{0}', space=sflag, size = 0x4, scoped, tag = 'scoped memory for tpu_custom_call.1']
    #allocation5 [shape = 'u8[4096]{0}', space=vmem, size = 0x1000, scoped, tag = 'input window, operand 1, single buffered']
    #allocation6 [shape = 's32[1]{0}', space=sflag, size = 0x4, scoped, tag = 'scoped memory for tpu_custom_call.1']
    #allocation7 [shape = 'u8[65536]{0}', space=vmem, size = 0x10000, scoped, tag = 'input window, operand 3, single buffered']
    %14 = vsyncpa [#allocation4], 0
    %15 = vsyncpa [#allocation6], 0
    // Predicated region
    $region2: #{tpu_custom_call.1} parent=1 // pred_check
      _
    $region3: #{tpu_custom_call.1} parent=1 // pred_check_branch
      %17 = sbr.rel (0) target = $region5
    $region4: #{tpu_custom_call.1} parent=1 // pred_region
      %s19 = ssub.s32 128, 128
      %20 = vsyncadd [#allocation4], %s19
      %s22 = sshll.u32 [#allocation3], 4
      %s23 = int_to_ptr.vmem [resolvable:$true] %s22
      %25 = dma.hbm_to_vmem [thread:$0]  %s0, 128, %s23, [#allocation4]
    $region5: #{tpu_custom_call.1} parent=1 // pred_fallthru
      _
    // Predicated region
    $region6: #{tpu_custom_call.1} parent=1 // pred_check
      _
    $region7: #{tpu_custom_call.1} parent=1 // pred_check_branch
      %27 = sbr.rel (0) target = $region9
    $region8: #{tpu_custom_call.1} parent=1 // pred_region
      %s29 = ssub.s32 128, 128
      %30 = vsyncadd [#allocation6], %s29
      %s32 = sshll.u32 [#allocation5], 4
      %s33 = int_to_ptr.vmem [resolvable:$true] %s32
      %35 = dma.hbm_to_vmem [thread:$0]  %s1, 128, %s33, [#allocation6]
    $region9: #{tpu_custom_call.1} parent=1 // pred_fallthru
      _
    // Predicated region
    $region10: #{tpu_custom_call.1} parent=1 // pred_check
      _
    $region11: #{tpu_custom_call.1} parent=1 // pred_check_branch
      %37 = sbr.rel (0) target = $region13
    $region12: #{tpu_custom_call.1} parent=1 // pred_region
      _
    $region13: #{tpu_custom_call.1} parent=1 // pred_fallthru
      _
    // Predicated region
    $region14: #{tpu_custom_call.1} parent=1 // pred_check
      _
    $region15: #{tpu_custom_call.1} parent=1 // pred_check_branch
      %39 = sbr.rel (0) target = $region17
    $region16: #{tpu_custom_call.1} parent=1 // pred_region
      %s41 = ssub.s32 2048, 2048
      %42 = vsyncadd [#allocation6], %s41
      %s43 = sshll.u32 [#allocation7], 4
      %s44 = int_to_ptr.vmem [resolvable:$true] %s43
      %49 = dma.hbm_to_vmem [thread:$0]  %s3, 2048, %s44, [#allocation6], 128, 128, 8
    $region17: #{tpu_custom_call.1} parent=1 // pred_fallthru
      _
    // Predicated region
    $region18: #{tpu_custom_call.1} parent=1 // pred_check
      _
    $region19: #{tpu_custom_call.1} parent=1 // pred_check_branch
      %51 = sbr.rel (0) target = $region21
    $region20: #{tpu_custom_call.1} parent=1 // pred_region
      _
    $region21: #{tpu_custom_call.1} parent=1 // pred_fallthru
      _
    // Predicated region
    $region22: #{tpu_custom_call.1} parent=1 // pred_check
      _
    $region23: #{tpu_custom_call.1} parent=1 // pred_check_branch
      %53 = sbr.rel (0) target = $region25
    $region24: #{tpu_custom_call.1} parent=1 // pred_region
      _
    $region25: #{tpu_custom_call.1} parent=1 // pred_fallthru
      _
    // Predicated region
    $region26: #{tpu_custom_call.1} parent=1 // pred_check
      _
    $region27: #{tpu_custom_call.1} parent=1 // pred_check_branch
      %55 = sbr.rel (0) target = $region29
    $region28: #{tpu_custom_call.1} parent=1 // pred_region
      _
    $region29: #{tpu_custom_call.1} parent=1 // pred_fallthru
      _
    // Predicated region
    $region30: #{tpu_custom_call.1} parent=1 // pred_check
      _
    $region31: #{tpu_custom_call.1} parent=1 // pred_check_branch
      %57 = sbr.rel (0) target = $region33
    $region32: #{tpu_custom_call.1} parent=1 // pred_region
      %58 = dma.done [#allocation4], 128
    $region33: #{tpu_custom_call.1} parent=1 // pred_fallthru
      _
    // Predicated region
    $region34: #{tpu_custom_call.1} parent=1 // pred_check
      _
    $region35: #{tpu_custom_call.1} parent=1 // pred_check_branch
      %60 = sbr.rel (0) target = $region37
    $region36: #{tpu_custom_call.1} parent=1 // pred_region
      %61 = dma.done [#allocation6], 128
    $region37: #{tpu_custom_call.1} parent=1 // pred_fallthru
      _
    // Predicated region
    $region38: #{tpu_custom_call.1} parent=1 // pred_check
      _
    $region39: #{tpu_custom_call.1} parent=1 // pred_check_branch
      %63 = sbr.rel (0) target = $region41
    $region40: #{tpu_custom_call.1} parent=1 // pred_region
      %64 = dma.done [#allocation6], 2048
    $region41: #{tpu_custom_call.1} parent=1 // pred_fallthru
      _
    %v65 = vld [vmem:[#allocation3] sm:$0xff]
    %v66 = vld [vmem:[#allocation5] sm:$0x1f]
    %v67 = vld [vmem:[%s2] sm:$0x1]
    %v69 = vlaneseq
    %v70 = vshrl.u32 %v69, 7
    %v71 = vsub.s32 0, %v70
    %v72 = vrot.slane %v67, %v71
    %vm74 = vcmask 39936
    %v76 = vsel %vm74, %v65, 0
    %vm78 = vcmask 1044480
    %v80 = vsel %vm78, %v66, 0
    %82 = vmatprep.subr.mxu0 0.0
    %83 = vmatpush1.msra.mxu0 %v80
    %84 = vmatprep.subr.mxu0 0.0
    %85 = vmatpush1.msra.mxu0 0.0
    %86 = vmatprep.subr.mxu0 0.0
    %87 = vmatpush1.msra.mxu0 0.0
    %88 = vmatprep.subr.mxu0 0.0
    %89 = vmatpush1.msra.mxu0 0.0
    %90 = vmatprep.subr.mxu0 0.0
    %91 = vmatpush1.msra.mxu0 0.0
    %92 = vmatprep.subr.mxu0 0.0
    %93 = vmatpush1.msra.mxu0 0.0
    %94 = vmatprep.subr.mxu0 0.0
    %95 = vmatpush1.msra.mxu0 0.0
    %96 = vmatprep.subr.mxu0 0.0
    %97 = vmatpush1.msra.mxu0 0.0
    %98 = vmatprep.subr.mxu0 0.0
    %99 = vmatpush1.msra.mxu0 0.0
    %100 = vmatprep.subr.mxu0 0.0
    %101 = vmatpush1.msra.mxu0 0.0
    %102 = vmatprep.subr.mxu0 0.0
    %103 = vmatpush1.msra.mxu0 0.0
    %104 = vmatprep.subr.mxu0 0.0
    %105 = vmatpush1.msra.mxu0 0.0
    %106 = vmatprep.subr.mxu0 0.0
    %107 = vmatpush1.msra.mxu0 0.0
    %108 = vmatprep.subr.mxu0 0.0
    %109 = vmatpush1.msra.mxu0 0.0
    %110 = vmatprep.subr.mxu0 0.0
    %111 = vmatpush1.msra.mxu0 0.0
    %112 = vmatprep.subr.mxu0 0.0
    %113 = vmatpush1.msra.mxu0 0.0
    %114 = vmatprep.subr.mxu0 0.0
    %115 = vmatpush1.msra.mxu0 0.0
    %116 = vmatprep.subr.mxu0 0.0
    %117 = vmatpush1.msra.mxu0 0.0
    %118 = vmatprep.subr.mxu0 0.0
    %119 = vmatpush1.msra.mxu0 0.0
    %120 = vmatprep.subr.mxu0 0.0
    %121 = vmatpush1.msra.mxu0 0.0
    %122 = vmatprep.subr.mxu0 0.0
    %123 = vmatpush1.msra.mxu0 0.0
    %124 = vmatprep.subr.mxu0 0.0
    %125 = vmatpush1.msra.mxu0 0.0
    %126 = vmatprep.subr.mxu0 0.0
    %127 = vmatpush1.msra.mxu0 0.0
    %128 = vmatprep.subr.mxu0 0.0
    %129 = vmatpush1.msra.mxu0 0.0
    %130 = vmatprep.subr.mxu0 0.0
    %131 = vmatpush1.msra.mxu0 0.0
    %132 = vmatprep.subr.mxu0 0.0
    %133 = vmatpush1.msra.mxu0 0.0
    %134 = vmatprep.subr.mxu0 0.0
    %135 = vmatpush1.msra.mxu0 0.0
    %136 = vmatprep.subr.mxu0 0.0
    %137 = vmatpush1.msra.mxu0 0.0
    %138 = vmatprep.subr.mxu0 0.0
    %139 = vmatpush1.msra.mxu0 0.0
    %140 = vmatprep.subr.mxu0 0.0
    %141 = vmatpush1.msra.mxu0 0.0
    %142 = vmatprep.subr.mxu0 0.0
    %143 = vmatpush1.msra.mxu0 0.0
    %144 = vmatprep.subr.mxu0 0.0
    %145 = vmatpush1.msra.mxu0 0.0
    %146 = vmatprep.mubr.f32.mxu0 0.0
    %147 = vmatmul.mubr.f32.gmra.mrb[0].mxu0 %v76
    %v148 = vpop.f32.mrb[0].mxu0
    %v149 = vadd.f32 %v72, %v148
    %v150 = vpop.f32.mrb[0].mxu0
    %151 = vdwg.mxu0
    %v152 = vmax.f32 %v149, 0.0
    %v153 = vld [vmem:[#allocation7] sm:$0xff]
    %v154 = vld [vmem:[#allocation7 + $0x8] sm:$0xff]
    %v155 = vld [vmem:[#allocation7 + $0x10] sm:$0xff]
    %v156 = vld [vmem:[#allocation7 + $0x18] sm:$0xff]
    %v157 = vld [vmem:[#allocation7 + $0x20] sm:$0xff]
    %v158 = vld [vmem:[#allocation7 + $0x28] sm:$0xff]
    %v159 = vld [vmem:[#allocation7 + $0x30] sm:$0xff]
    %v160 = vld [vmem:[#allocation7 + $0x38] sm:$0xff]
    %v161 = vld [vmem:[#allocation7 + $0x40] sm:$0xff]
    %v162 = vld [vmem:[#allocation7 + $0x48] sm:$0xff]
    %v163 = vld [vmem:[#allocation7 + $0x50] sm:$0xff]
    %v164 = vld [vmem:[#allocation7 + $0x58] sm:$0xff]
    %v165 = vld [vmem:[#allocation7 + $0x60] sm:$0xff]
    %v166 = vld [vmem:[#allocation7 + $0x68] sm:$0xff]
    %v167 = vld [vmem:[#allocation7 + $0x70] sm:$0xff]
    %v168 = vld [vmem:[#allocation7 + $0x78] sm:$0xff]
    %v169 = vld [vmem:[%s4] sm:$0x1]
    %v171 = vlaneseq
    %v172 = vshrl.u32 %v171, 7
    %v173 = vsub.s32 0, %v172
    %v174 = vrot.slane %v169, %v173
    %176 = vmatprep.subr.mxu0 0.0
    %177 = vmatpush1.msra.mxu0 %v153
    %178 = vmatprep.subr.mxu0 0.0
    %179 = vmatpush1.msra.mxu0 %v154
    %180 = vmatprep.subr.mxu0 0.0
    %181 = vmatpush1.msra.mxu0 %v155
    %182 = vmatprep.subr.mxu0 0.0
    %183 = vmatpush1.msra.mxu0 %v156
    %184 = vmatprep.subr.mxu0 0.0
    %185 = vmatpush1.msra.mxu0 %v157
    %186 = vmatprep.subr.mxu0 0.0
    %187 = vmatpush1.msra.mxu0 %v158
    %188 = vmatprep.subr.mxu0 0.0
    %189 = vmatpush1.msra.mxu0 %v159
    %190 = vmatprep.subr.mxu0 0.0
    %191 = vmatpush1.msra.mxu0 %v160
    %192 = vmatprep.subr.mxu0 0.0
    %193 = vmatpush1.msra.mxu0 %v161
    %194 = vmatprep.subr.mxu0 0.0
    %195 = vmatpush1.msra.mxu0 %v162
    %196 = vmatprep.subr.mxu0 0.0
    %197 = vmatpush1.msra.mxu0 %v163
    %198 = vmatprep.subr.mxu0 0.0
    %199 = vmatpush1.msra.mxu0 %v164
    %200 = vmatprep.subr.mxu0 0.0
    %201 = vmatpush1.msra.mxu0 %v165
    %202 = vmatprep.subr.mxu0 0.0
    %203 = vmatpush1.msra.mxu0 %v166
    %204 = vmatprep.subr.mxu0 0.0
    %205 = vmatpush1.msra.mxu0 %v167
    %206 = vmatprep.subr.mxu0 0.0
    %207 = vmatpush1.msra.mxu0 %v168
    %208 = vmatprep.subr.mxu0 0.0
    %209 = vmatpush1.msra.mxu0 0.0
    %210 = vmatprep.subr.mxu0 0.0
    %211 = vmatpush1.msra.mxu0 0.0
    %212 = vmatprep.subr.mxu0 0.0
    %213 = vmatpush1.msra.mxu0 0.0
    %214 = vmatprep.subr.mxu0 0.0
    %215 = vmatpush1.msra.mxu0 0.0
    %216 = vmatprep.subr.mxu0 0.0
    %217 = vmatpush1.msra.mxu0 0.0
    %218 = vmatprep.subr.mxu0 0.0
    %219 = vmatpush1.msra.mxu0 0.0
    %220 = vmatprep.subr.mxu0 0.0
    %221 = vmatpush1.msra.mxu0 0.0
    %222 = vmatprep.subr.mxu0 0.0
    %223 = vmatpush1.msra.mxu0 0.0
    %224 = vmatprep.subr.mxu0 0.0
    %225 = vmatpush1.msra.mxu0 0.0
    %226 = vmatprep.subr.mxu0 0.0
    %227 = vmatpush1.msra.mxu0 0.0
    %228 = vmatprep.subr.mxu0 0.0
    %229 = vmatpush1.msra.mxu0 0.0
    %230 = vmatprep.subr.mxu0 0.0
    %231 = vmatpush1.msra.mxu0 0.0
    %232 = vmatprep.subr.mxu0 0.0
    %233 = vmatpush1.msra.mxu0 0.0
    %234 = vmatprep.subr.mxu0 0.0
    %235 = vmatpush1.msra.mxu0 0.0
    %236 = vmatprep.subr.mxu0 0.0
    %237 = vmatpush1.msra.mxu0 0.0
    %238 = vmatprep.subr.mxu0 0.0
    %239 = vmatpush1.msra.mxu0 0.0
    %240 = vmatprep.mubr.f32.mxu0 0.0
    %241 = vmatmul.mubr.f32.gmra.mrb[0].mxu0 %v152
    %v242 = vpop.f32.mrb[0].mxu0
    %v243 = vadd.f32 %v174, %v242
    %v244 = vpop.f32.mrb[0].mxu0
    %245 = vdwg.mxu0
    %v246 = vmax.f32 %v243, 0.0
    %v247 = vld [vmem:[%s5] sm:$0x1]
    %v249 = vlaneseq
    %v250 = vshrl.u32 %v249, 7
    %v251 = vsub.s32 0, %v250
    %v252 = vrot.slane %v247, %v251
    %v254 = vmul.f32 %v246, %v252
    %255 = vadd.xlane.f32.xlu0 %v254
    %v256 = vpop.xlane.xlu0 %255
    %v257 = vld [vmem:[#allocation2] sm:$0x1]
    %v259 = vlaneseq
    %v260 = vshrl.u32 %v259, 7
    %v261 = vsub.s32 0, %v260
    %v262 = vrot.slane %v257, %v261
    %v264 = vadd.f32 %v256, %v262
    %vm265 = vcmask 7168
    %266 = vst.msk [vmem:[%s7] sm:$0xff] %vm265, %v264
    // Predicated region
    $region42: #{tpu_custom_call.1} parent=1 // pred_check
      _
    $region43: #{tpu_custom_call.1} parent=1 // pred_check_branch
      %268 = sbr.rel (0) target = $region45
    $region44: #{tpu_custom_call.1} parent=1 // pred_region
      _
    $region45: #{tpu_custom_call.1} parent=1 // pred_fallthru
      _
    // Predicated region
    $region46: #{tpu_custom_call.1} parent=1 // pred_check
      _
    $region47: #{tpu_custom_call.1} parent=1 // pred_check_branch
      %270 = sbr.rel (0) target = $region49
    $region48: #{tpu_custom_call.1} parent=1 // pred_region
      _
    $region49: #{tpu_custom_call.1} parent=1 // pred_fallthru
      _
    %271 = vsyncpa [#allocation4], 1
    %272 = vsyncpa [#allocation6], 1

</llo_original>
